<compile_context>
chip_gen: v7x
topology: tpu7x:2x2x1
jax: 0.10.0
libtpu: 0.0.40
codegen_flags: <defaults>
</compile_context>

<pallas_src>
import functools

import jax
import jax.numpy as jnp
from jax.experimental import pallas as pl
from jax.experimental.pallas import tpu as pltpu

EMB_DIM = 128   # lane-aligned embedding dimension
TILE_B = 128    # triples scored per grid step (lane-dense score tile)


def _transe_tile_kernel(h_ids_ref, r_ids_ref, t_ids_ref,   # (1, 1, TB) int32 id tiles
                        tab_ref,                            # (2D, Vtot) bf16 resident [hi ; lo]
                        out_ref,                            # (1, 1, TB) f32 scores
                        *, num_entities):
    h_ids = h_ids_ref[0]          # (1, TB) int32
    r_ids = r_ids_ref[0]
    t_ids = t_ids_ref[0]
    tab = tab_ref[...]            # (2D, Vtot) bf16
    two_d, vtot = tab.shape
    d_dim = two_d // 2
    tb = h_ids.shape[1]

    # Single signed indicator: +1 at head row, +1 at (Ve + rel) row, -1 at tail
    # row, so the matmul computes h + r - t directly (h == t cancels to 0, as
    # it should).  Built once per tile; 0/+-1 are exact in bf16.
    row = jax.lax.broadcasted_iota(jnp.int32, (vtot, tb), 0)
    ind = ((row == h_ids).astype(jnp.float32)
           + (row == r_ids + num_entities).astype(jnp.float32)
           - (row == t_ids).astype(jnp.float32)).astype(jnp.bfloat16)

    # One bf16 MXU pass: (2D, Vtot) @ (Vtot, TB) -> (2D, TB) f32.
    res = jnp.dot(tab, ind, preferred_element_type=jnp.float32)
    d = res[:d_dim] + res[d_dim:]            # hi-plane + lo-plane -> ~f32 exact (D, TB)

    # L2 over the embedding (sublane) axis -> lane-dense (1, TB) score row.
    out_ref[0] = jnp.sqrt(jnp.sum(d * d, axis=0, keepdims=True))


@functools.partial(jax.jit, static_argnames=("num_entities", "tile_b"))
def transe_predict(table_cat, triples, *, num_entities, tile_b=TILE_B):
    """||h + r - t||_2 for each (B, 3) triple.

    table_cat: (2D, Ve+Vr) bf16, hi/lo split of [ent_emb ; rel_emb]^T.
    """
    B = triples.shape[0]
    nb = pl.cdiv(B, tile_b)
    Bp = nb * tile_b

    ids = triples.astype(jnp.int32)
    ids = jnp.pad(ids, ((0, Bp - B), (0, 0)))          # pad with id 0 (valid row)
    h_ids = ids[:, 0].reshape(nb, 1, tile_b)
    r_ids = ids[:, 1].reshape(nb, 1, tile_b)
    t_ids = ids[:, 2].reshape(nb, 1, tile_b)

    two_d, vtot = table_cat.shape

    ids_spec = pl.BlockSpec((1, 1, tile_b), lambda i: (i, 0, 0))
    # Whole-array VMEM resident: DMA'd once, no double buffering across the grid.
    tab_spec = pl.BlockSpec(memory_space=pltpu.MemorySpace.VMEM)

    # Explicit scoped-VMEM budget: resident table + iota/compare temporaries +
    # bf16 indicator + matmul result + (double-buffered) id/out tiles + headroom.
    vmem_bytes = (table_cat.size * table_cat.dtype.itemsize   # resident bf16 table
                  + vtot * tile_b * (4 + 4 + 2)               # iota + f32 combine + bf16 indicator
                  + two_d * tile_b * 4                        # (2D, TB) f32 matmul result
                  + 8 * tile_b * 4 * 2)                       # id + out tiles, double-buffered
    vmem_limit = int(min(100 * 1024 * 1024,
                         max(32 * 1024 * 1024, 2 * vmem_bytes + (16 << 20))))

    kernel = functools.partial(_transe_tile_kernel, num_entities=num_entities)
    scores = pl.pallas_call(
        kernel,
        out_shape=jax.ShapeDtypeStruct((nb, 1, tile_b), jnp.float32),
        grid_spec=pltpu.PrefetchScalarGridSpec(
            num_scalar_prefetch=0,
            grid=(nb,),
            in_specs=[ids_spec, ids_spec, ids_spec, tab_spec],
            out_specs=pl.BlockSpec((1, 1, tile_b), lambda i: (i, 0, 0)),
        ),
        compiler_params=pltpu.CompilerParams(
            dimension_semantics=("parallel",),
            vmem_limit_bytes=vmem_limit),
    )(h_ids, r_ids, t_ids, table_cat)
    return scores.reshape(Bp)[:B]


class KRLTransE:
    """JAX/Pallas instantiation of the abstract KRLModel interface (TransE)."""

    def __init__(self, num_entities, num_relations, emb_dim=EMB_DIM, margin=1.0,
                 key=None):
        if key is None:
            key = jax.random.PRNGKey(0)
        k_ent, k_rel = jax.random.split(key)
        bound = 6.0 / jnp.sqrt(jnp.float32(emb_dim))
        self.num_entities = int(num_entities)
        self.num_relations = int(num_relations)
        self.ent_emb = jax.random.uniform(
            k_ent, (num_entities, emb_dim), jnp.float32, -bound, bound)
        rel = jax.random.uniform(
            k_rel, (num_relations, emb_dim), jnp.float32, -bound, bound)
        self.rel_emb = rel / jnp.linalg.norm(rel, axis=-1, keepdims=True)
        self.margin = jnp.float32(margin)
        self._pack_tables()

    def _pack_tables(self):
        """Build the kernel's resident table from the f32 embeddings.

        [ent_emb ; rel_emb] (Vtot, D) -> transpose (D, Vtot) -> split into
        hi/lo bf16 planes stacked along D -> (2D, Vtot) bf16.  hi + lo
        reconstructs the f32 value to ~2^-18 relative error, so a single-pass
        bf16 MXU matmul reproduces the f32 gather within tolerance.
        """
        # TODO(synk): any in-place update of ent_emb / rel_emb must call
        #             _pack_tables() again or predict()/embed() will desync.
        full_t = jnp.concatenate([self.ent_emb, self.rel_emb], axis=0).T
        full_t = full_t.astype(jnp.float32)
        hi = full_t.astype(jnp.bfloat16)
        lo = (full_t - hi.astype(jnp.float32)).astype(jnp.bfloat16)
        self.table_cat = jnp.concatenate([hi, lo], axis=0)   # (2D, Ve+Vr) bf16

    # --- abstract-method implementations ---------------------------------
    def embed(self, triples):
        """Plain-JAX reference lookup (glue); the kernel gathers rows itself."""
        h = jnp.take(self.ent_emb, triples[:, 0], axis=0)
        r = jnp.take(self.rel_emb, triples[:, 1], axis=0)
        t = jnp.take(self.ent_emb, triples[:, 2], axis=0)
        return h, r, t

    def predict(self, triples):
        """Dissimilarity score for (B,3) triples via the Pallas kernel."""
        return transe_predict(self.table_cat, triples,
                              num_entities=self.num_entities)

    def loss(self, pos_scores, neg_scores):
        """Margin ranking loss (elementwise glue)."""
        return jnp.mean(jnp.maximum(self.margin + pos_scores - neg_scores, 0.0))

    def forward(self, pos_triples, neg_triples):
        # Fuse pos + neg scoring into ONE pallas_call (shared resident table).
        B = pos_triples.shape[0]
        all_scores = transe_predict(
            self.table_cat,
            jnp.concatenate([pos_triples, neg_triples], axis=0),
            num_entities=self.num_entities)
        pos, neg = all_scores[:B], all_scores[B:]
        return self.loss(pos, neg), pos, neg


if __name__ == "__main__":
    num_entities, num_relations, batch = 32, 8, 8
    model = KRLTransE(num_entities, num_relations, emb_dim=EMB_DIM,
                      margin=1.0, key=jax.random.PRNGKey(0))

    k_h, k_r, k_t, k_n = jax.random.split(jax.random.PRNGKey(0), 4)
    pos_triples = jnp.stack([
        jax.random.randint(k_h, (batch,), 0, num_entities),
        jax.random.randint(k_r, (batch,), 0, num_relations),
        jax.random.randint(k_t, (batch,), 0, num_entities)], axis=1).astype(jnp.int32)
    # corrupt tails for negatives
    neg_triples = pos_triples.at[:, 2].set(
        jax.random.randint(k_n, (batch,), 0, num_entities).astype(jnp.int32))

    # fused pos+neg scoring (single pallas_call) + separate predict() path
    loss_val, pos_scores, neg_scores = model.forward(pos_triples, neg_triples)
    pos_only = model.predict(pos_triples)
    jax.block_until_ready((loss_val, pos_scores, neg_scores, pos_only))

    # Pure-JAX reference check
    def ref_score(tr):
        h, r, t = model.embed(tr)
        return jnp.linalg.norm(h + r - t, axis=-1)

    ref_pos = ref_score(pos_triples)
    ref_neg = ref_score(neg_triples)
    ref_loss = jnp.mean(jnp.maximum(model.margin + ref_pos - ref_neg, 0.0))

    assert jnp.allclose(pos_scores, ref_pos, rtol=1e-3, atol=1e-3)
    assert jnp.allclose(neg_scores, ref_neg, rtol=1e-3, atol=1e-3)
    assert jnp.allclose(pos_only, ref_pos, rtol=1e-3, atol=1e-3)
    assert jnp.allclose(loss_val, ref_loss, rtol=1e-3, atol=1e-3)

    print("KERNEL_OK")
</pallas_src>

<mosaic_0001>
module attributes {stable_mosaic.version = 11 : i64} {
  func.func @_transe_tile_kernel(%arg0: i32, %arg1: memref<1x1x128xi32, #tpu.memory_space<vmem>>, %arg2: memref<1x1x128xi32, #tpu.memory_space<vmem>>, %arg3: memref<1x1x128xi32, #tpu.memory_space<vmem>>, %arg4: memref<256x40xbf16, #tpu.memory_space<vmem>>, %arg5: memref<1x1x128xf32, #tpu.memory_space<vmem>>) attributes {dimension_semantics = [#tpu.dimension_semantics<parallel>], iteration_bounds = array<i64: 1>, scalar_prefetch = 0 : i64, scratch_operands = 0 : i64, tpu.core_type = #tpu.core_type<tc>, window_params = [{transform_indices = @transform_0, window_bounds = array<i64: 1, 1, 128>}, {transform_indices = @transform_1, window_bounds = array<i64: 1, 1, 128>}, {transform_indices = @transform_2, window_bounds = array<i64: 1, 1, 128>}, {pipeline_mode = #tpu.pipeline_mode<synchronous>, transform_indices = @transform_3, window_bounds = array<i64: 256, 40>}, {transform_indices = @transform_4, window_bounds = array<i64: 1, 1, 128>}]} {
    %c0 = arith.constant 0 : index
    %c0_0 = arith.constant 0 : index
    %c0_1 = arith.constant 0 : index
    %0 = vector.load %arg1[%c0, %c0_0, %c0_1] : memref<1x1x128xi32, #tpu.memory_space<vmem>>, vector<1x1x128xi32>
    %1 = vector.shape_cast %0 : vector<1x1x128xi32> to vector<1x128xi32>
    %c0_2 = arith.constant 0 : index
    %c0_3 = arith.constant 0 : index
    %c0_4 = arith.constant 0 : index
    %2 = vector.load %arg2[%c0_2, %c0_3, %c0_4] : memref<1x1x128xi32, #tpu.memory_space<vmem>>, vector<1x1x128xi32>
    %3 = vector.shape_cast %2 : vector<1x1x128xi32> to vector<1x128xi32>
    %c0_5 = arith.constant 0 : index
    %c0_6 = arith.constant 0 : index
    %c0_7 = arith.constant 0 : index
    %4 = vector.load %arg3[%c0_5, %c0_6, %c0_7] : memref<1x1x128xi32, #tpu.memory_space<vmem>>, vector<1x1x128xi32>
    %5 = vector.shape_cast %4 : vector<1x1x128xi32> to vector<1x128xi32>
    %c0_8 = arith.constant 0 : index
    %c0_9 = arith.constant 0 : index
    %6 = vector.load %arg4[%c0_8, %c0_9] : memref<256x40xbf16, #tpu.memory_space<vmem>>, vector<256x40xbf16>
    %7 = tpu.iota {dimensions = array<i32: 0>} : vector<40x128xi32>
    %8 = vector.broadcast %1 : vector<1x128xi32> to vector<40x128xi32>
    %9 = arith.cmpi eq, %7, %8 : vector<40x128xi32>
    %10 = arith.extui %9 : vector<40x128xi1> to vector<40x128xi32>
    %11 = arith.sitofp %10 : vector<40x128xi32> to vector<40x128xf32>
    %c32_i32 = arith.constant 32 : i32
    %12 = vector.broadcast %c32_i32 : i32 to vector<1x128xi32>
    %13 = arith.addi %3, %12 : vector<1x128xi32>
    %14 = vector.broadcast %13 : vector<1x128xi32> to vector<40x128xi32>
    %15 = arith.cmpi eq, %7, %14 : vector<40x128xi32>
    %16 = arith.extui %15 : vector<40x128xi1> to vector<40x128xi32>
    %17 = arith.sitofp %16 : vector<40x128xi32> to vector<40x128xf32>
    %18 = arith.addf %11, %17 : vector<40x128xf32>
    %19 = vector.broadcast %5 : vector<1x128xi32> to vector<40x128xi32>
    %20 = arith.cmpi eq, %7, %19 : vector<40x128xi32>
    %21 = arith.extui %20 : vector<40x128xi1> to vector<40x128xi32>
    %22 = arith.sitofp %21 : vector<40x128xi32> to vector<40x128xf32>
    %23 = arith.subf %18, %22 : vector<40x128xf32>
    %24 = arith.truncf %23 : vector<40x128xf32> to vector<40x128xbf16>
    %cst = arith.constant dense<0.000000e+00> : vector<256x128xf32>
    %25 = tpu.matmul %6, %24, %cst {dimension_numbers = #tpu.dot_dimension_numbers<[1], [0], [0], [1], [0, 0, 1, 1], [], []>} : vector<256x40xbf16>, vector<40x128xbf16>, vector<256x128xf32> -> vector<256x128xf32>
    %26 = vector.extract_strided_slice %25 {offsets = [0, 0], sizes = [128, 128], strides = [1, 1]} : vector<256x128xf32> to vector<128x128xf32>
    %27 = vector.extract_strided_slice %25 {offsets = [128, 0], sizes = [128, 128], strides = [1, 1]} : vector<256x128xf32> to vector<128x128xf32>
    %28 = arith.addf %26, %27 : vector<128x128xf32>
    %29 = arith.mulf %28, %28 : vector<128x128xf32>
    %cst_10 = arith.constant dense<0.000000e+00> : vector<128xf32>
    %30 = vector.multi_reduction <add>, %29, %cst_10 [0] : vector<128x128xf32> to vector<128xf32>
    %31 = vector.shape_cast %30 : vector<128xf32> to vector<1x128xf32>
    %32 = math.sqrt %31 : vector<1x128xf32>
    %c0_11 = arith.constant 0 : index
    %c0_12 = arith.constant 0 : index
    %c0_13 = arith.constant 0 : index
    %33 = vector.load %arg5[%c0_11, %c0_12, %c0_13] : memref<1x1x128xf32, #tpu.memory_space<vmem>>, vector<1x1x128xf32>
    %34 = vector.shape_cast %33 : vector<1x1x128xf32> to vector<1x128xf32>
    %35 = vector.shape_cast %32 : vector<1x128xf32> to vector<1x1x128xf32>
    tpu.vector_store %arg5[%c0_11, %c0_12, %c0_13], %35 {strides = array<i32>} : memref<1x1x128xf32, #tpu.memory_space<vmem>>, vector<1x1x128xf32>,
    return
  }
  func.func @transform_0(%arg0: i32) -> (i32, i32, i32) {
    %c0_i32 = arith.constant 0 : i32
    %c0_i32_0 = arith.constant 0 : i32
    %c0_i32_1 = arith.constant 0 : i32
    return %arg0, %c0_i32, %c0_i32_0 : i32, i32, i32
  }
  func.func @transform_1(%arg0: i32) -> (i32, i32, i32) {
    %c0_i32 = arith.constant 0 : i32
    %c0_i32_0 = arith.constant 0 : i32
    %c0_i32_1 = arith.constant 0 : i32
    return %arg0, %c0_i32, %c0_i32_0 : i32, i32, i32
  }
  func.func @transform_2(%arg0: i32) -> (i32, i32, i32) {
    %c0_i32 = arith.constant 0 : i32
    %c0_i32_0 = arith.constant 0 : i32
    %c0_i32_1 = arith.constant 0 : i32
    return %arg0, %c0_i32, %c0_i32_0 : i32, i32, i32
  }
  func.func @transform_3(%arg0: i32) -> (i32, i32) {
    %c0_i32 = arith.constant 0 : i32
    %c0_i32_0 = arith.constant 0 : i32
    %c0_i32_1 = arith.constant 0 : i32
    return %c0_i32, %c0_i32_0 : i32, i32
  }
  func.func @transform_4(%arg0: i32) -> (i32, i32, i32) {
    %c0_i32 = arith.constant 0 : i32
    %c0_i32_0 = arith.constant 0 : i32
    %c0_i32_1 = arith.constant 0 : i32
    return %arg0, %c0_i32, %c0_i32_0 : i32, i32, i32
  }
}

</mosaic_0001>

<llo_original>
// kernel: transe_predict.1
$region0: #{transe_predict.1}
  #allocation0 [shape = 'u32[]', space=smem, size = 0x4, offset = 0x4, fixed_abs, tag = 'smem constant byte address 0x4 - core index']
  #allocation1 [shape = 'u32[144,128]{1,0:T(1,128)}', space=vmem, size = 0x12000, scoped, tag = 'internal scratch']
  %s0 = inlined_call_operand.vmem [shape: s32[1,1,128], index: 0, kind: input, shape index: {}]
  %s1 = inlined_call_operand.vmem [shape: s32[1,1,128], index: 1, kind: input, shape index: {}]
  %s2 = inlined_call_operand.vmem [shape: s32[1,1,128], index: 2, kind: input, shape index: {}]
  %s3 = inlined_call_operand.vmem [shape: bf16[256,40], index: 3, kind: input, shape index: {}]
  %s4 = inlined_call_operand.vmem [shape: f32[1,1,128], index: 4, kind: output, shape index: {}]
  %s5 = sld [smem:[#allocation0]]
  $region26: #{transe_predict.1} parent=0
    _
  %s7 = ssub.s32 1, %s5
  %s8 = scalar_select 0, %s7, %s5
  // Predicated region
  $region2: #{transe_predict.1} parent=0 // pred_check
    _
  $region3: #{transe_predict.1} parent=0 // pred_check_branch
    %10 = sbr.rel (0) target = $region5
  $region4: #{transe_predict.1} parent=0 // pred_region
    _
  $region5: #{transe_predict.1} parent=0 // pred_fallthru
    _
  // Predicated region
  $region6: #{transe_predict.1} parent=0 // pred_check
    _
  $region7: #{transe_predict.1} parent=0 // pred_check_branch
    %12 = sbr.rel (0) target = $region9
  $region8: #{transe_predict.1} parent=0 // pred_region
    _
  $region9: #{transe_predict.1} parent=0 // pred_fallthru
    _
  // Predicated region
  $region10: #{transe_predict.1} parent=0 // pred_check
    _
  $region11: #{transe_predict.1} parent=0 // pred_check_branch
    %14 = sbr.rel (0) target = $region13
  $region12: #{transe_predict.1} parent=0 // pred_region
    _
  $region13: #{transe_predict.1} parent=0 // pred_fallthru
    _
  // Predicated region
  $region14: #{transe_predict.1} parent=0 // pred_check
    _
  $region15: #{transe_predict.1} parent=0 // pred_check_branch
    %16 = sbr.rel (0) target = $region17
  $region16: #{transe_predict.1} parent=0 // pred_region
    _
  $region17: #{transe_predict.1} parent=0 // pred_fallthru
    _
  %v18 = vld [vmem:[%s0] sm:$0x1]
  %v19 = vld [vmem:[%s1] sm:$0x1]
  %v20 = vld [vmem:[%s2] sm:$0x1]
  %v21 = vld [vmem:[%s3] sm:$0xf]
  %v22 = vld [vmem:[%s3 + $0x4] sm:$0xf]
  %v23 = vld [vmem:[%s3 + $0x8] sm:$0xf]
  %v24 = vld [vmem:[%s3 + $0xc] sm:$0xf]
  %v25 = vld [vmem:[%s3 + $0x10] sm:$0xf]
  %v26 = vld [vmem:[%s3 + $0x14] sm:$0xf]
  %v27 = vld [vmem:[%s3 + $0x18] sm:$0xf]
  %v28 = vld [vmem:[%s3 + $0x1c] sm:$0xf]
  %v29 = vld [vmem:[%s3 + $0x20] sm:$0xf]
  %v30 = vld [vmem:[%s3 + $0x24] sm:$0xf]
  %v31 = vld [vmem:[%s3 + $0x28] sm:$0xf]
  %v32 = vld [vmem:[%s3 + $0x2c] sm:$0xf]
  %v33 = vld [vmem:[%s3 + $0x30] sm:$0xf]
  %v34 = vld [vmem:[%s3 + $0x34] sm:$0xf]
  %v35 = vld [vmem:[%s3 + $0x38] sm:$0xf]
  %v36 = vld [vmem:[%s3 + $0x3c] sm:$0xf]
  %v37 = vld [vmem:[%s3 + $0x40] sm:$0xf]
  %v38 = vld [vmem:[%s3 + $0x44] sm:$0xf]
  %v39 = vld [vmem:[%s3 + $0x48] sm:$0xf]
  %v40 = vld [vmem:[%s3 + $0x4c] sm:$0xf]
  %v41 = vld [vmem:[%s3 + $0x50] sm:$0xf]
  %v42 = vld [vmem:[%s3 + $0x54] sm:$0xf]
  %v43 = vld [vmem:[%s3 + $0x58] sm:$0xf]
  %v44 = vld [vmem:[%s3 + $0x5c] sm:$0xf]
  %v45 = vld [vmem:[%s3 + $0x60] sm:$0xf]
  %v46 = vld [vmem:[%s3 + $0x64] sm:$0xf]
  %v47 = vld [vmem:[%s3 + $0x68] sm:$0xf]
  %v48 = vld [vmem:[%s3 + $0x6c] sm:$0xf]
  %v49 = vld [vmem:[%s3 + $0x70] sm:$0xf]
  %v50 = vld [vmem:[%s3 + $0x74] sm:$0xf]
  %v51 = vld [vmem:[%s3 + $0x78] sm:$0xf]
  %v52 = vld [vmem:[%s3 + $0x7c] sm:$0xf]
  %v53 = vlaneseq
  %v54 = vshrl.u32 %v53, 7
  %v55 = vadd.s32 %v54, 8
  %v56 = vadd.s32 %v54, 16
  %v57 = vadd.s32 %v54, 24
  %v58 = vadd.s32 %v54, 32
  %v59 = vlaneseq
  %v60 = vshrl.u32 %v59, 7
  %v61 = vsub.s32 0, %v60
  %v62 = vrot.slane %v18, %v61
  %vm63 = vcmp.eq.s32.totalorder %v54, %v62
  %vm64 = vcmp.eq.s32.totalorder %v55, %v62
  %vm65 = vcmp.eq.s32.totalorder %v56, %v62
  %vm66 = vcmp.eq.s32.totalorder %v57, %v62
  %vm67 = vcmp.eq.s32.totalorder %v58, %v62
  %v68 = vsel %vm63, 1, 0
  %v69 = vsel %vm64, 1, 0
  %v70 = vsel %vm65, 1, 0
  %v71 = vsel %vm66, 1, 0
  %v72 = vsel %vm67, 1, 0
  %v73 = vcvt.s32.f32 %v68
  %v74 = vcvt.s32.f32 %v69
  %v75 = vcvt.s32.f32 %v70
  %v76 = vcvt.s32.f32 %v71
  %v77 = vcvt.s32.f32 %v72
  %v78 = vadd.s32 %v19, 32
  %v79 = vlaneseq
  %v80 = vshrl.u32 %v79, 7
  %v81 = vsub.s32 0, %v80
  %v82 = vrot.slane %v78, %v81
  %vm83 = vcmp.eq.s32.totalorder %v54, %v82
  %vm84 = vcmp.eq.s32.totalorder %v55, %v82
  %vm85 = vcmp.eq.s32.totalorder %v56, %v82
  %vm86 = vcmp.eq.s32.totalorder %v57, %v82
  %vm87 = vcmp.eq.s32.totalorder %v58, %v82
  %v88 = vsel %vm83, 1, 0
  %v89 = vsel %vm84, 1, 0
  %v90 = vsel %vm85, 1, 0
  %v91 = vsel %vm86, 1, 0
  %v92 = vsel %vm87, 1, 0
  %v93 = vcvt.s32.f32 %v88
  %v94 = vcvt.s32.f32 %v89
  %v95 = vcvt.s32.f32 %v90
  %v96 = vcvt.s32.f32 %v91
  %v97 = vcvt.s32.f32 %v92
  %v98 = vadd.f32 %v73, %v93
  %v99 = vadd.f32 %v74, %v94
  %v100 = vadd.f32 %v75, %v95
  %v101 = vadd.f32 %v76, %v96
  %v102 = vadd.f32 %v77, %v97
  %v103 = vlaneseq
  %v104 = vshrl.u32 %v103, 7
  %v105 = vsub.s32 0, %v104
  %v106 = vrot.slane %v20, %v105
  %vm107 = vcmp.eq.s32.totalorder %v54, %v106
  %vm108 = vcmp.eq.s32.totalorder %v55, %v106
  %vm109 = vcmp.eq.s32.totalorder %v56, %v106
  %vm110 = vcmp.eq.s32.totalorder %v57, %v106
  %vm111 = vcmp.eq.s32.totalorder %v58, %v106
  %v112 = vsel %vm107, 1, 0
  %v113 = vsel %vm108, 1, 0
  %v114 = vsel %vm109, 1, 0
  %v115 = vsel %vm110, 1, 0
  %v116 = vsel %vm111, 1, 0
  %v117 = vcvt.s32.f32 %v112
  %v118 = vcvt.s32.f32 %v113
  %v119 = vcvt.s32.f32 %v114
  %v120 = vcvt.s32.f32 %v115
  %v121 = vcvt.s32.f32 %v116
  %v122 = vsub.f32 %v98, %v117
  %v123 = vsub.f32 %v99, %v118
  %v124 = vsub.f32 %v100, %v119
  %v125 = vsub.f32 %v101, %v120
  %v126 = vsub.f32 %v102, %v121
  %v127 = vpack.c.bf16 %v123, %v122
  %v128 = vpack.c.bf16 %v125, %v124
  %v129 = vpack.c.bf16 %v126, %v126
  %v162 = vunpack.c.l.b16 %v21
  %v163 = vunpack.c.l.b16 %v22
  %v164 = vunpack.c.l.b16 %v23
  %v165 = vunpack.c.l.b16 %v24
  %v166 = vunpack.c.l.b16 %v25
  %v167 = vunpack.c.l.b16 %v26
  %v168 = vunpack.c.l.b16 %v27
  %v169 = vunpack.c.l.b16 %v28
  %v170 = vunpack.c.l.b16 %v29
  %v171 = vunpack.c.l.b16 %v30
  %v172 = vunpack.c.l.b16 %v31
  %v173 = vunpack.c.l.b16 %v32
  %v174 = vunpack.c.l.b16 %v33
  %v175 = vunpack.c.l.b16 %v34
  %v176 = vunpack.c.l.b16 %v35
  %v177 = vunpack.c.l.b16 %v36
  %v178 = vunpack.c.l.b16 %v37
  %v179 = vunpack.c.l.b16 %v38
  %v180 = vunpack.c.l.b16 %v39
  %v181 = vunpack.c.l.b16 %v40
  %v182 = vunpack.c.l.b16 %v41
  %v183 = vunpack.c.l.b16 %v42
  %v184 = vunpack.c.l.b16 %v43
  %v185 = vunpack.c.l.b16 %v44
  %v186 = vunpack.c.l.b16 %v45
  %v187 = vunpack.c.l.b16 %v46
  %v188 = vunpack.c.l.b16 %v47
  %v189 = vunpack.c.l.b16 %v48
  %v190 = vunpack.c.l.b16 %v49
  %v191 = vunpack.c.l.b16 %v50
  %v192 = vunpack.c.l.b16 %v51
  %v193 = vunpack.c.l.b16 %v52
  %v194 = vpack.c.b16 %v163, %v162
  %v195 = vpack.c.b16 %v165, %v164
  %v196 = vpack.c.b16 %v167, %v166
  %v197 = vpack.c.b16 %v169, %v168
  %v198 = vpack.c.b16 %v171, %v170
  %v199 = vpack.c.b16 %v173, %v172
  %v200 = vpack.c.b16 %v175, %v174
  %v201 = vpack.c.b16 %v177, %v176
  %v202 = vpack.c.b16 %v179, %v178
  %v203 = vpack.c.b16 %v181, %v180
  %v204 = vpack.c.b16 %v183, %v182
  %v205 = vpack.c.b16 %v185, %v184
  %v206 = vpack.c.b16 %v187, %v186
  %v207 = vpack.c.b16 %v189, %v188
  %v208 = vpack.c.b16 %v191, %v190
  %v209 = vpack.c.b16 %v193, %v192
  %vm210 = vcmask 326656
  %v212 = vsel %vm210, %v194, 0
  %v215 = vsel %vm210, %v195, 0
  %v218 = vsel %vm210, %v196, 0
  %v221 = vsel %vm210, %v197, 0
  %v224 = vsel %vm210, %v198, 0
  %v227 = vsel %vm210, %v199, 0
  %v230 = vsel %vm210, %v200, 0
  %v233 = vsel %vm210, %v201, 0
  %v236 = vsel %vm210, %v202, 0
  %v239 = vsel %vm210, %v203, 0
  %v242 = vsel %vm210, %v204, 0
  %v245 = vsel %vm210, %v205, 0
  %v248 = vsel %vm210, %v206, 0
  %v251 = vsel %vm210, %v207, 0
  %v254 = vsel %vm210, %v208, 0
  %v257 = vsel %vm210, %v209, 0
  %vm259 = vcmask 1043456
  %v261 = vsel %vm259, %v129, 0
  %263 = vmatprep.subr.bf16.mxu0 0
  %264 = vmatpush1.bf16.msra.mxu0 %v127
  %265 = vmatprep.subr.bf16.mxu0 0
  %266 = vmatpush1.bf16.msra.mxu0 %v128
  %267 = vmatprep.subr.bf16.mxu0 0
  %268 = vmatpush1.bf16.msra.mxu0 %v261
  %269 = vmatprep.subr.bf16.mxu0 0
  %270 = vmatpush1.bf16.msra.mxu0 0
  %271 = vmatprep.subr.bf16.mxu0 0
  %272 = vmatpush1.bf16.msra.mxu0 0
  %273 = vmatprep.subr.bf16.mxu0 0
  %274 = vmatpush1.bf16.msra.mxu0 0
  %275 = vmatprep.subr.bf16.mxu0 0
  %276 = vmatpush1.bf16.msra.mxu0 0
  %277 = vmatprep.subr.bf16.mxu0 0
  %278 = vmatpush1.bf16.msra.mxu0 0
  %279 = vmatprep.subr.bf16.mxu0 0
  %280 = vmatpush1.bf16.msra.mxu0 0
  %281 = vmatprep.subr.bf16.mxu0 0
  %282 = vmatpush1.bf16.msra.mxu0 0
  %283 = vmatprep.subr.bf16.mxu0 0
  %284 = vmatpush1.bf16.msra.mxu0 0
  %285 = vmatprep.subr.bf16.mxu0 0
  %286 = vmatpush1.bf16.msra.mxu0 0
  %287 = vmatprep.subr.bf16.mxu0 0
  %288 = vmatpush1.bf16.msra.mxu0 0
  %289 = vmatprep.subr.bf16.mxu0 0
  %290 = vmatpush1.bf16.msra.mxu0 0
  %291 = vmatprep.subr.bf16.mxu0 0
  %292 = vmatpush1.bf16.msra.mxu0 0
  %293 = vmatprep.subr.bf16.mxu0 0
  %294 = vmatpush1.bf16.msra.mxu0 0
  %295 = vmatprep.mubr.bf16.mxu0 0
  %296 = vmatmul.mubr.bf16.gmra.mrb[0].mxu0 %v212
  %v297 = vpop.f32.mrb[0].mxu0
  %v298 = vadd.f32 0.0, %v297
  %v299 = vpop.f32.mrb[0].mxu0
  %v300 = vpop.f32.mrb[0].mxu0
  %v301 = vadd.f32 0.0, %v300
  %v302 = vpop.f32.mrb[0].mxu0
  %303 = vmatprep.mubr.bf16.mxu0 0
  %304 = vmatmul.mubr.bf16.gmra.mrb[0].mxu0 %v215
  %v305 = vpop.f32.mrb[0].mxu0
  %v306 = vadd.f32 0.0, %v305
  %v307 = vpop.f32.mrb[0].mxu0
  %v308 = vpop.f32.mrb[0].mxu0
  %v309 = vadd.f32 0.0, %v308
  %v310 = vpop.f32.mrb[0].mxu0
  %311 = vmatprep.mubr.bf16.mxu0 0
  %312 = vmatmul.mubr.bf16.gmra.mrb[0].mxu0 %v218
  %v313 = vpop.f32.mrb[0].mxu0
  %v314 = vadd.f32 0.0, %v313
  %v315 = vpop.f32.mrb[0].mxu0
  %v316 = vpop.f32.mrb[0].mxu0
  %v317 = vadd.f32 0.0, %v316
  %v318 = vpop.f32.mrb[0].mxu0
  %319 = vmatprep.mubr.bf16.mxu0 0
  %320 = vmatmul.mubr.bf16.gmra.mrb[0].mxu0 %v221
  %v321 = vpop.f32.mrb[0].mxu0
  %v322 = vadd.f32 0.0, %v321
  %v323 = vpop.f32.mrb[0].mxu0
  %v324 = vpop.f32.mrb[0].mxu0
  %v325 = vadd.f32 0.0, %v324
  %v326 = vpop.f32.mrb[0].mxu0
  %327 = vmatprep.mubr.bf16.mxu0 0
  %328 = vmatmul.mubr.bf16.gmra.mrb[0].mxu0 %v224
  %v329 = vpop.f32.mrb[0].mxu0
  %v330 = vadd.f32 0.0, %v329
  %v331 = vpop.f32.mrb[0].mxu0
  %v332 = vpop.f32.mrb[0].mxu0
  %v333 = vadd.f32 0.0, %v332
  %v334 = vpop.f32.mrb[0].mxu0
  %335 = vmatprep.mubr.bf16.mxu0 0
  %336 = vmatmul.mubr.bf16.gmra.mrb[0].mxu0 %v227
  %v337 = vpop.f32.mrb[0].mxu0
  %v338 = vadd.f32 0.0, %v337
  %v339 = vpop.f32.mrb[0].mxu0
  %v340 = vpop.f32.mrb[0].mxu0
  %v341 = vadd.f32 0.0, %v340
  %v342 = vpop.f32.mrb[0].mxu0
  %343 = vmatprep.mubr.bf16.mxu0 0
  %344 = vmatmul.mubr.bf16.gmra.mrb[0].mxu0 %v230
  %v345 = vpop.f32.mrb[0].mxu0
  %v346 = vadd.f32 0.0, %v345
  %v347 = vpop.f32.mrb[0].mxu0
  %v348 = vpop.f32.mrb[0].mxu0
  %v349 = vadd.f32 0.0, %v348
  %v350 = vpop.f32.mrb[0].mxu0
  %351 = vmatprep.mubr.bf16.mxu0 0
  %352 = vmatmul.mubr.bf16.gmra.mrb[0].mxu0 %v233
  %v353 = vpop.f32.mrb[0].mxu0
  %v354 = vadd.f32 0.0, %v353
  %v355 = vpop.f32.mrb[0].mxu0
  %v356 = vpop.f32.mrb[0].mxu0
  %v357 = vadd.f32 0.0, %v356
  %v358 = vpop.f32.mrb[0].mxu0
  %359 = vmatprep.mubr.bf16.mxu0 0
  %360 = vmatmul.mubr.bf16.gmra.mrb[0].mxu0 %v236
  %v361 = vpop.f32.mrb[0].mxu0
  %v362 = vadd.f32 0.0, %v361
  %v363 = vpop.f32.mrb[0].mxu0
  %v364 = vpop.f32.mrb[0].mxu0
  %v365 = vadd.f32 0.0, %v364
  %v366 = vpop.f32.mrb[0].mxu0
  %367 = vmatprep.mubr.bf16.mxu0 0
  %368 = vmatmul.mubr.bf16.gmra.mrb[0].mxu0 %v239
  %v369 = vpop.f32.mrb[0].mxu0
  %v370 = vadd.f32 0.0, %v369
  %v371 = vpop.f32.mrb[0].mxu0
  %v372 = vpop.f32.mrb[0].mxu0
  %v373 = vadd.f32 0.0, %v372
  %v374 = vpop.f32.mrb[0].mxu0
  %375 = vmatprep.mubr.bf16.mxu0 0
  %376 = vmatmul.mubr.bf16.gmra.mrb[0].mxu0 %v242
  %v377 = vpop.f32.mrb[0].mxu0
  %v378 = vadd.f32 0.0, %v377
  %v379 = vpop.f32.mrb[0].mxu0
  %v380 = vpop.f32.mrb[0].mxu0
  %v381 = vadd.f32 0.0, %v380
  %v382 = vpop.f32.mrb[0].mxu0
  %383 = vmatprep.mubr.bf16.mxu0 0
  %384 = vmatmul.mubr.bf16.gmra.mrb[0].mxu0 %v245
  %v385 = vpop.f32.mrb[0].mxu0
  %v386 = vadd.f32 0.0, %v385
  %v387 = vpop.f32.mrb[0].mxu0
  %v388 = vpop.f32.mrb[0].mxu0
  %v389 = vadd.f32 0.0, %v388
  %v390 = vpop.f32.mrb[0].mxu0
  %391 = vmatprep.mubr.bf16.mxu0 0
  %392 = vmatmul.mubr.bf16.gmra.mrb[0].mxu0 %v248
  %v393 = vpop.f32.mrb[0].mxu0
  %v394 = vadd.f32 0.0, %v393
  %v395 = vpop.f32.mrb[0].mxu0
  %v396 = vpop.f32.mrb[0].mxu0
  %v397 = vadd.f32 0.0, %v396
  %v398 = vpop.f32.mrb[0].mxu0
  %399 = vmatprep.mubr.bf16.mxu0 0
  %400 = vmatmul.mubr.bf16.gmra.mrb[0].mxu0 %v251
  %v401 = vpop.f32.mrb[0].mxu0
  %v402 = vadd.f32 0.0, %v401
  %v403 = vpop.f32.mrb[0].mxu0
  %v404 = vpop.f32.mrb[0].mxu0
  %v405 = vadd.f32 0.0, %v404
  %v406 = vpop.f32.mrb[0].mxu0
  %407 = vmatprep.mubr.bf16.mxu0 0
  %408 = vmatmul.mubr.bf16.gmra.mrb[0].mxu0 %v254
  %v409 = vpop.f32.mrb[0].mxu0
  %v410 = vadd.f32 0.0, %v409
  %v411 = vpop.f32.mrb[0].mxu0
  %v412 = vpop.f32.mrb[0].mxu0
  %v413 = vadd.f32 0.0, %v412
  %v414 = vpop.f32.mrb[0].mxu0
  %415 = vmatprep.mubr.bf16.mxu0 0
  %416 = vmatmul.mubr.bf16.gmra.mrb[0].mxu0 %v257
  %v417 = vpop.f32.mrb[0].mxu0
  %v418 = vadd.f32 0.0, %v417
  %v419 = vpop.f32.mrb[0].mxu0
  %v420 = vpop.f32.mrb[0].mxu0
  %v421 = vadd.f32 0.0, %v420
  %v422 = vpop.f32.mrb[0].mxu0
  %423 = vdwg.mxu0
  %v424 = vadd.f32 %v298, %v362
  %v425 = vadd.f32 %v301, %v365
  %v426 = vadd.f32 %v306, %v370
  %v427 = vadd.f32 %v309, %v373
  %v428 = vadd.f32 %v314, %v378
  %v429 = vadd.f32 %v317, %v381
  %v430 = vadd.f32 %v322, %v386
  %v431 = vadd.f32 %v325, %v389
  %v432 = vadd.f32 %v330, %v394
  %v433 = vadd.f32 %v333, %v397
  %v434 = vadd.f32 %v338, %v402
  %v435 = vadd.f32 %v341, %v405
  %v436 = vadd.f32 %v346, %v410
  %v437 = vadd.f32 %v349, %v413
  %v438 = vadd.f32 %v354, %v418
  %v439 = vadd.f32 %v357, %v421
  %v440 = vmul.f32 %v424, %v424
  %v441 = vmul.f32 %v425, %v425
  %v442 = vmul.f32 %v426, %v426
  %v443 = vmul.f32 %v427, %v427
  %v444 = vmul.f32 %v428, %v428
  %v445 = vmul.f32 %v429, %v429
  %v446 = vmul.f32 %v430, %v430
  %v447 = vmul.f32 %v431, %v431
  %v448 = vmul.f32 %v432, %v432
  %v449 = vmul.f32 %v433, %v433
  %v450 = vmul.f32 %v434, %v434
  %v451 = vmul.f32 %v435, %v435
  %v452 = vmul.f32 %v436, %v436
  %v453 = vmul.f32 %v437, %v437
  %v454 = vmul.f32 %v438, %v438
  %v455 = vmul.f32 %v439, %v439
  %v456 = vadd.f32 %v440, %v441
  %v457 = vadd.f32 %v456, %v442
  %v458 = vadd.f32 %v457, %v443
  %v459 = vadd.f32 %v458, %v444
  %v460 = vadd.f32 %v459, %v445
  %v461 = vadd.f32 %v460, %v446
  %v462 = vadd.f32 %v461, %v447
  %v463 = vadd.f32 %v462, %v448
  %v464 = vadd.f32 %v463, %v449
  %v465 = vadd.f32 %v464, %v450
  %v466 = vadd.f32 %v465, %v451
  %v467 = vadd.f32 %v466, %v452
  %v468 = vadd.f32 %v467, %v453
  %v469 = vadd.f32 %v468, %v454
  %v470 = vadd.f32 %v469, %v455
  %v471 = vrot.slane %v470, 4
  %v472 = vadd.f32 %v470, %v471
  %v473 = vrot.slane %v472, 2
  %v474 = vadd.f32 %v472, %v473
  %v475 = vrot.slane %v474, 1
  %v476 = vadd.f32 %v474, %v475
  %v477 = vrsqrt.pop %v476
  %v478 = vmul.f32 %v476, %v477
  %vm479 = vcmp.eq.f32.partialorder %v476, inf
  %v480 = vsel %vm479, %v476, %v478
  %vm481 = vcmp.eq.f32.partialorder %v476, 0.0
  %v482 = vand.u32 %v476, 2147483648
  %v483 = vsel %vm481, %v482, %v480
  %484 = vst [vmem:[%s4] sm:$0x1] %v483
  // Predicated region
  $region18: #{transe_predict.1} parent=0 // pred_check
    _
  $region19: #{transe_predict.1} parent=0 // pred_check_branch
    %486 = sbr.rel (0) target = $region21
  $region20: #{transe_predict.1} parent=0 // pred_region
    _
  $region21: #{transe_predict.1} parent=0 // pred_fallthru
    _
  // Predicated region
  $region22: #{transe_predict.1} parent=0 // pred_check
    _
  $region23: #{transe_predict.1} parent=0 // pred_check_branch
    %488 = sbr.rel (0) target = $region25
  $region24: #{transe_predict.1} parent=0 // pred_region
    _
  $region25: #{transe_predict.1} parent=0 // pred_fallthru
    _

</llo_original>
